<compile_context>
chip_gen: v5e
topology: v5e:2x2
jax: 0.10.0
libtpu: 0.0.40
codegen_flags: <defaults>
</compile_context>

<pallas_src>
import functools

import jax
import jax.numpy as jnp
from jax import lax
from jax.experimental import pallas as pl
from jax.experimental.pallas import tpu as pltpu


def _sns_kernel(inv_tau_ref, scores_ref, noise_ref, out_ref, *, k):
    inv_tau = inv_tau_ref[0]
    phi = scores_ref[...].astype(jnp.float32) * inv_tau
    gumbels = phi + noise_ref[...]                       # Gumbel(phi, 1) sample

    n = gumbels.shape[-1]
    m = max(1, (n - 1).bit_length())                     # bits for tie-break field

    # order-preserving f32 -> int32 map (monotone for all finite values)
    bits = lax.bitcast_convert_type(gumbels, jnp.int32)
    skey = jnp.where(bits < 0, bits ^ jnp.int32(0x7FFFFFFF), bits)

    col = lax.broadcasted_iota(jnp.int32, gumbels.shape, dimension=gumbels.ndim - 1)
    rev_col = jnp.int32(n - 1) - col
    # pack: high (32 - m) bits hold the sortable value, low m bits hold the
    # reversed column index (smaller column wins near-ties).  Keys are unique
    # per row, so one max() per top-k step selects exactly one lane.
    key = (skey & jnp.int32(-(1 << m))) | rev_col

    removed = jnp.iinfo(jnp.int32).min
    khot = jnp.zeros(gumbels.shape, jnp.float32)
    for _ in range(k):                                   # k is static & small
        mx = jnp.max(key, axis=-1, keepdims=True)        # single XLU reduction
        sel = key == mx                                  # unique winner per row
        khot = jnp.where(sel, 1.0, khot)
        key = jnp.where(sel, removed, key)

    # forward value: khot + soft - stop_gradient(soft) == khot exactly.
    # TODO(synk): straight-through gradient would need jax.custom_vjp around
    # the wrapper; only the forward value is kernelized.
    out_ref[...] = khot.astype(out_ref.dtype)


def _round_up(x, mult):
    return (x + mult - 1) // mult * mult


def straight_through_subset_sampler(scores, tau, *, k, key=None):
    """Forward pass of StraightThroughSubsetSampler. Returns (out, None)."""
    if key is None:
        key = jax.random.PRNGKey(0)
    *lead, n = scores.shape
    assert 1 <= k <= n, f"k={k} must be in [1, {n}]"

    r = 1
    for d in lead:
        r *= d
    s2 = scores.reshape(r, n)                 # native dtype; cast to f32 in-kernel

    # lane-dense last dim: pad N to a multiple of 128 with -inf scores so the
    # padded lanes can never be selected (avoids masked partial stores).
    n_pad = _round_up(n, 128)
    if n_pad != n:
        s2 = jnp.pad(s2, ((0, 0), (0, n_pad - n)), constant_values=-jnp.inf)

    # Row tile: keep the live blocks per grid step around <=4 MiB (safe for
    # v7x's 64 MiB VMEM with double buffering of 3 arrays), sublane-multiple.
    budget = 4 * 1024 * 1024
    per_row = 3 * 4 * n_pad                   # scores + noise + out (~f32)
    tile_r = max(8, min(512, (budget // per_row) // 8 * 8))
    if r <= tile_r:
        tile_r = r                            # single block over all rows
        r_pad = r
    else:
        r_pad = _round_up(r, tile_r)
    if r_pad != r:
        s2 = jnp.pad(s2, ((0, r_pad - r), (0, 0)))

    noise = jax.random.gumbel(key, (r_pad, n_pad), dtype=jnp.float32)
    inv_tau = (1.0 / jnp.asarray(tau, jnp.float32)).reshape(1)

    grid = (r_pad // tile_r,)
    out = pl.pallas_call(
        functools.partial(_sns_kernel, k=k),
        out_shape=jax.ShapeDtypeStruct((r_pad, n_pad), scores.dtype),
        grid=grid,
        in_specs=[
            pl.BlockSpec(memory_space=pltpu.MemorySpace.SMEM),     # 1/tau scalar
            pl.BlockSpec((tile_r, n_pad), lambda i: (i, 0)),       # scores tile
            pl.BlockSpec((tile_r, n_pad), lambda i: (i, 0)),       # gumbel noise
        ],
        out_specs=pl.BlockSpec((tile_r, n_pad), lambda i: (i, 0)),
        compiler_params=pltpu.CompilerParams(
            dimension_semantics=("parallel",)),
    )(inv_tau, s2, noise)

    out = out[:r, :n].reshape(*lead, n)
    return out, None


if __name__ == "__main__":
    root = jax.random.PRNGKey(0)
    k_scores, k_noise = jax.random.split(root)

    B, H, N = 2, 4, 128   # scores (..., N); top-k over last dim
    K = 4
    TAU = 0.5

    scores = jax.random.normal(k_scores, (B, H, N), dtype=jnp.float32)

    out, aux = straight_through_subset_sampler(scores, TAU, k=K, key=k_noise)
    out = jax.block_until_ready(out)

    # sanity checks: forward value is a k-hot mask along the last dim
    assert aux is None
    assert out.shape == (B, H, N)
    row_sums = jnp.sum(out, axis=-1)
    assert bool(jnp.all(row_sums == K)), row_sums
    assert bool(jnp.all((out == 0.0) | (out == 1.0)))

    print("KERNEL_OK")
</pallas_src>

<mosaic_0001>
module attributes {stable_mosaic.version = 11 : i64} {
  func.func @_sns_kernel(%arg0: i32, %arg1: memref<1xf32, #tpu.memory_space<smem>>, %arg2: memref<8x128xf32, #tpu.memory_space<vmem>>, %arg3: memref<8x128xf32, #tpu.memory_space<vmem>>, %arg4: memref<8x128xf32, #tpu.memory_space<vmem>>) attributes {dimension_semantics = [#tpu.dimension_semantics<parallel>], iteration_bounds = array<i64: 1>, scalar_prefetch = 0 : i64, scratch_operands = 0 : i64, tpu.core_type = #tpu.core_type<tc>, window_params = [{transform_indices = @transform_0, window_bounds = array<i64: 1>}, {transform_indices = @transform_1, window_bounds = array<i64: 8, 128>}, {transform_indices = @transform_2, window_bounds = array<i64: 8, 128>}, {transform_indices = @transform_3, window_bounds = array<i64: 8, 128>}]} {
    %c0 = arith.constant 0 : index
    %0 = memref.load %arg1[%c0] : memref<1xf32, #tpu.memory_space<smem>>
    %c0_0 = arith.constant 0 : index
    %c0_1 = arith.constant 0 : index
    %1 = vector.load %arg2[%c0_0, %c0_1] : memref<8x128xf32, #tpu.memory_space<vmem>>, vector<8x128xf32>
    %2 = vector.broadcast %0 : f32 to vector<8x128xf32>
    %3 = arith.mulf %1, %2 : vector<8x128xf32>
    %c0_2 = arith.constant 0 : index
    %c0_3 = arith.constant 0 : index
    %4 = vector.load %arg3[%c0_2, %c0_3] : memref<8x128xf32, #tpu.memory_space<vmem>>, vector<8x128xf32>
    %5 = arith.addf %3, %4 : vector<8x128xf32>
    %6 = tpu.bitcast %5 : vector<8x128xf32> -> vector<8x128xi32>
    %c0_i32 = arith.constant 0 : i32
    %7 = vector.broadcast %c0_i32 : i32 to vector<8x128xi32>
    %8 = arith.cmpi slt, %6, %7 : vector<8x128xi32>
    %c2147483647_i32 = arith.constant 2147483647 : i32
    %9 = vector.broadcast %c2147483647_i32 : i32 to vector<8x128xi32>
    %10 = arith.xori %6, %9 : vector<8x128xi32>
    %11 = arith.select %8, %10, %6 : vector<8x128xi1>, vector<8x128xi32>
    %12 = tpu.iota {dimensions = array<i32: 1>} : vector<8x128xi32>
    %c127_i32 = arith.constant 127 : i32
    %13 = vector.broadcast %c127_i32 : i32 to vector<8x128xi32>
    %14 = arith.subi %13, %12 : vector<8x128xi32>
    %c-128_i32 = arith.constant -128 : i32
    %15 = vector.broadcast %c-128_i32 : i32 to vector<8x128xi32>
    %16 = arith.andi %11, %15 : vector<8x128xi32>
    %17 = arith.ori %16, %14 : vector<8x128xi32>
    %cst = arith.constant 0.000000e+00 : f32
    %18 = vector.broadcast %cst : f32 to vector<8x128xf32>
    %cst_4 = arith.constant dense<-2147483648> : vector<8xi32>
    %19 = vector.multi_reduction <maxsi>, %17, %cst_4 [1] : vector<8x128xi32> to vector<8xi32>
    %20 = vector.shape_cast %19 : vector<8xi32> to vector<8x1xi32>
    %21 = vector.broadcast %20 : vector<8x1xi32> to vector<8x128xi32>
    %22 = arith.cmpi eq, %17, %21 : vector<8x128xi32>
    %cst_5 = arith.constant 1.000000e+00 : f32
    %23 = vector.broadcast %cst_5 : f32 to vector<8x128xf32>
    %24 = arith.select %22, %23, %18 : vector<8x128xi1>, vector<8x128xf32>
    %c-2147483648_i32 = arith.constant -2147483648 : i32
    %25 = vector.broadcast %c-2147483648_i32 : i32 to vector<8x128xi32>
    %26 = arith.select %22, %25, %17 : vector<8x128xi1>, vector<8x128xi32>
    %cst_6 = arith.constant dense<-2147483648> : vector<8xi32>
    %27 = vector.multi_reduction <maxsi>, %26, %cst_6 [1] : vector<8x128xi32> to vector<8xi32>
    %28 = vector.shape_cast %27 : vector<8xi32> to vector<8x1xi32>
    %29 = vector.broadcast %28 : vector<8x1xi32> to vector<8x128xi32>
    %30 = arith.cmpi eq, %26, %29 : vector<8x128xi32>
    %cst_7 = arith.constant 1.000000e+00 : f32
    %31 = vector.broadcast %cst_7 : f32 to vector<8x128xf32>
    %32 = arith.select %30, %31, %24 : vector<8x128xi1>, vector<8x128xf32>
    %c-2147483648_i32_8 = arith.constant -2147483648 : i32
    %33 = vector.broadcast %c-2147483648_i32_8 : i32 to vector<8x128xi32>
    %34 = arith.select %30, %33, %26 : vector<8x128xi1>, vector<8x128xi32>
    %cst_9 = arith.constant dense<-2147483648> : vector<8xi32>
    %35 = vector.multi_reduction <maxsi>, %34, %cst_9 [1] : vector<8x128xi32> to vector<8xi32>
    %36 = vector.shape_cast %35 : vector<8xi32> to vector<8x1xi32>
    %37 = vector.broadcast %36 : vector<8x1xi32> to vector<8x128xi32>
    %38 = arith.cmpi eq, %34, %37 : vector<8x128xi32>
    %cst_10 = arith.constant 1.000000e+00 : f32
    %39 = vector.broadcast %cst_10 : f32 to vector<8x128xf32>
    %40 = arith.select %38, %39, %32 : vector<8x128xi1>, vector<8x128xf32>
    %c-2147483648_i32_11 = arith.constant -2147483648 : i32
    %41 = vector.broadcast %c-2147483648_i32_11 : i32 to vector<8x128xi32>
    %42 = arith.select %38, %41, %34 : vector<8x128xi1>, vector<8x128xi32>
    %cst_12 = arith.constant dense<-2147483648> : vector<8xi32>
    %43 = vector.multi_reduction <maxsi>, %42, %cst_12 [1] : vector<8x128xi32> to vector<8xi32>
    %44 = vector.shape_cast %43 : vector<8xi32> to vector<8x1xi32>
    %45 = vector.broadcast %44 : vector<8x1xi32> to vector<8x128xi32>
    %46 = arith.cmpi eq, %42, %45 : vector<8x128xi32>
    %cst_13 = arith.constant 1.000000e+00 : f32
    %47 = vector.broadcast %cst_13 : f32 to vector<8x128xf32>
    %48 = arith.select %46, %47, %40 : vector<8x128xi1>, vector<8x128xf32>
    %c0_14 = arith.constant 0 : index
    %c0_15 = arith.constant 0 : index
    %49 = vector.load %arg4[%c0_14, %c0_15] : memref<8x128xf32, #tpu.memory_space<vmem>>, vector<8x128xf32>
    tpu.vector_store %arg4[%c0_14, %c0_15], %48 {strides = array<i32>} : memref<8x128xf32, #tpu.memory_space<vmem>>, vector<8x128xf32>,
    return
  }
  func.func @transform_0(%arg0: i32) -> i32 {
    %c0_i32 = arith.constant 0 : i32
    %c0_i32_0 = arith.constant 0 : i32
    return %c0_i32 : i32
  }
  func.func @transform_1(%arg0: i32) -> (i32, i32) {
    %c0_i32 = arith.constant 0 : i32
    %c0_i32_0 = arith.constant 0 : i32
    return %arg0, %c0_i32 : i32, i32
  }
  func.func @transform_2(%arg0: i32) -> (i32, i32) {
    %c0_i32 = arith.constant 0 : i32
    %c0_i32_0 = arith.constant 0 : i32
    return %arg0, %c0_i32 : i32, i32
  }
  func.func @transform_3(%arg0: i32) -> (i32, i32) {
    %c0_i32 = arith.constant 0 : i32
    %c0_i32_0 = arith.constant 0 : i32
    return %arg0, %c0_i32 : i32, i32
  }
}

</mosaic_0001>

<llo_original>
// kernel: tpu_custom_call.1
$region0: #{tpu_custom_call.1}
  #allocation0 [shape = 'u32[]', space=smem, size = 0x4, offset = 0x4, fixed_abs, tag = 'smem constant byte address 0x4 - core index']
  #allocation1 [shape = 'u32[72,128]{1,0:T(1,128)}', space=vmem, size = 0x9000, scoped, tag = 'internal scratch']
  #allocation2 [shape = 'f32[1]{0:T(128)S(6)}', space=smem, size = 0x200, scoped, tag = 'scoped memory for tpu_custom_call.1']
  %s0 = inlined_call_operand.<no memory space> [shape: f32[1], index: 0, kind: input, shape index: {}]
  %s1 = inlined_call_operand.hbm [shape: f32[8,128], index: 1, kind: input, shape index: {}]
  %s2 = inlined_call_operand.hbm [shape: f32[8,128], index: 2, kind: input, shape index: {}]
  %s3 = inlined_call_operand.hbm [shape: f32[8,128], index: 3, kind: output, shape index: {}]
  %s4 = sld [smem:[#allocation0]]
  $region30: #{tpu_custom_call.1} parent=0
    _
  %s6 = ssub.s32 1, %s4
  %s7 = scalar_select 0, %s6, %s4
  %8 = sst [smem:[#allocation2]] %s0
  $region1: #{tpu_custom_call.1} parent=0
    #allocation3 [shape = 'u8[4096]{0}', space=vmem, size = 0x1000, scoped, tag = 'input window, operand 1, single buffered']
    #allocation4 [shape = 's32[1]{0}', space=sflag, size = 0x4, scoped, tag = 'scoped memory for tpu_custom_call.1']
    #allocation5 [shape = 's32[1]{0}', space=sflag, size = 0x4, scoped, tag = 'scoped memory for tpu_custom_call.1']
    #allocation6 [shape = 'u8[4096]{0}', space=vmem, size = 0x1000, scoped, tag = 'input window, operand 2, single buffered']
    #allocation7 [shape = 's32[1]{0}', space=sflag, size = 0x4, scoped, tag = 'scoped memory for tpu_custom_call.1']
    #allocation8 [shape = 'u8[4096]{0}', space=vmem, size = 0x1000, scoped, tag = 'output window, operand 0, single buffered']
    %9 = vsyncpa [#allocation4], 0
    %10 = vsyncpa [#allocation7], 0
    %11 = vsyncpa [#allocation5], 0
    // Predicated region
    $region2: #{tpu_custom_call.1} parent=1 // pred_check
      _
    $region3: #{tpu_custom_call.1} parent=1 // pred_check_branch
      %13 = sbr.rel (0) target = $region5
    $region4: #{tpu_custom_call.1} parent=1 // pred_region
      _
    $region5: #{tpu_custom_call.1} parent=1 // pred_fallthru
      _
    // Predicated region
    $region6: #{tpu_custom_call.1} parent=1 // pred_check
      _
    $region7: #{tpu_custom_call.1} parent=1 // pred_check_branch
      %15 = sbr.rel (0) target = $region9
    $region8: #{tpu_custom_call.1} parent=1 // pred_region
      %17 = vsyncadd [#allocation4], 0
      %s19 = sshll.u32 %s1, 4
      %s20 = int_to_ptr.hbm [resolvable:$true] %s19
      %s21 = sshll.u32 [#allocation3], 4
      %s22 = int_to_ptr.vmem [resolvable:$true] %s21
      %24 = dma.hbm_to_vmem [thread:$0]  %s20, 128, %s22, [#allocation4]
    $region9: #{tpu_custom_call.1} parent=1 // pred_fallthru
      _
    // Predicated region
    $region10: #{tpu_custom_call.1} parent=1 // pred_check
      _
    $region11: #{tpu_custom_call.1} parent=1 // pred_check_branch
      %26 = sbr.rel (0) target = $region13
    $region12: #{tpu_custom_call.1} parent=1 // pred_region
      %28 = vsyncadd [#allocation7], 0
      %s30 = sshll.u32 %s2, 4
      %s31 = int_to_ptr.hbm [resolvable:$true] %s30
      %s32 = sshll.u32 [#allocation6], 4
      %s33 = int_to_ptr.vmem [resolvable:$true] %s32
      %35 = dma.hbm_to_vmem [thread:$0]  %s31, 128, %s33, [#allocation7]
    $region13: #{tpu_custom_call.1} parent=1 // pred_fallthru
      _
    // Predicated region
    $region14: #{tpu_custom_call.1} parent=1 // pred_check
      _
    $region15: #{tpu_custom_call.1} parent=1 // pred_check_branch
      %37 = sbr.rel (0) target = $region17
    $region16: #{tpu_custom_call.1} parent=1 // pred_region
      %39 = dma.done [#allocation4], 128
    $region17: #{tpu_custom_call.1} parent=1 // pred_fallthru
      _
    // Predicated region
    $region18: #{tpu_custom_call.1} parent=1 // pred_check
      _
    $region19: #{tpu_custom_call.1} parent=1 // pred_check_branch
      %41 = sbr.rel (0) target = $region21
    $region20: #{tpu_custom_call.1} parent=1 // pred_region
      %43 = dma.done [#allocation7], 128
    $region21: #{tpu_custom_call.1} parent=1 // pred_fallthru
      _
    %s44 = sld [smem:[#allocation2]]
    %v45 = vld [vmem:[#allocation3] sm:$0xff]
    %v46 = vstv %s44
    %v47 = vmul.f32 %v45, %v46
    %v48 = vld [vmem:[#allocation6] sm:$0xff]
    %v49 = vadd.f32 %v47, %v48
    %vm51 = vcmp.lt.s32.totalorder %v49, 0
    %v52 = vxor.u32 %v49, 2147483647
    %v53 = vsel %vm51, %v52, %v49
    %v54 = vlaneseq
    %v55 = vand.u32 %v54, 127
    %v56 = vsub.s32 127, %v55
    %v57 = vand.u32 %v53, 4294967168
    %v58 = vor.u32 %v57, %v56
    %v59 = vand.u32 %v58, 65535
    %v60 = vshra.s32 %v58, 16
    %v61 = vcvt.s32.f32 %v59
    %v62 = vcvt.s32.f32 %v60
    %63 = vmax.xlane.f32.xlu0 %v62
    %v64 = vpop.xlane.xlu0 %63
    %vm65 = vcmp.eq.f32.partialorder %v62, %v64
    %v66 = vsel %vm65, %v61, -inf
    %67 = vmax.xlane.f32.xlu0 %v66
    %v68 = vpop.xlane.xlu0 %67
    %v69 = vcvt.f32.s32 %v68
    %v70 = vcvt.f32.s32 %v64
    %v71 = vshll.u32 %v70, 16
    %v72 = vadd.s32 %v71, %v69
    %vm73 = vcmp.eq.s32.totalorder %v58, %v72
    %v74 = vsel %vm73, 1.0, 0.0
    %v75 = vsel %vm73, 2147483648, %v58
    %v76 = vand.u32 %v75, 65535
    %v77 = vshra.s32 %v75, 16
    %v78 = vcvt.s32.f32 %v76
    %v79 = vcvt.s32.f32 %v77
    %80 = vmax.xlane.f32.xlu0 %v79
    %v81 = vpop.xlane.xlu0 %80
    %vm82 = vcmp.eq.f32.partialorder %v79, %v81
    %v83 = vsel %vm82, %v78, -inf
    %84 = vmax.xlane.f32.xlu0 %v83
    %v85 = vpop.xlane.xlu0 %84
    %v86 = vcvt.f32.s32 %v85
    %v87 = vcvt.f32.s32 %v81
    %v88 = vshll.u32 %v87, 16
    %v89 = vadd.s32 %v88, %v86
    %vm90 = vcmp.eq.s32.totalorder %v75, %v89
    %v91 = vsel %vm90, 1.0, %v74
    %v92 = vsel %vm90, 2147483648, %v75
    %v93 = vand.u32 %v92, 65535
    %v94 = vshra.s32 %v92, 16
    %v95 = vcvt.s32.f32 %v93
    %v96 = vcvt.s32.f32 %v94
    %97 = vmax.xlane.f32.xlu0 %v96
    %v98 = vpop.xlane.xlu0 %97
    %vm99 = vcmp.eq.f32.partialorder %v96, %v98
    %v100 = vsel %vm99, %v95, -inf
    %101 = vmax.xlane.f32.xlu0 %v100
    %v102 = vpop.xlane.xlu0 %101
    %v103 = vcvt.f32.s32 %v102
    %v104 = vcvt.f32.s32 %v98
    %v105 = vshll.u32 %v104, 16
    %v106 = vadd.s32 %v105, %v103
    %vm107 = vcmp.eq.s32.totalorder %v92, %v106
    %v108 = vsel %vm107, 1.0, %v91
    %v109 = vsel %vm107, 2147483648, %v92
    %v110 = vand.u32 %v109, 65535
    %v111 = vshra.s32 %v109, 16
    %v112 = vcvt.s32.f32 %v110
    %v113 = vcvt.s32.f32 %v111
    %114 = vmax.xlane.f32.xlu0 %v113
    %v115 = vpop.xlane.xlu0 %114
    %vm116 = vcmp.eq.f32.partialorder %v113, %v115
    %v117 = vsel %vm116, %v112, -inf
    %118 = vmax.xlane.f32.xlu0 %v117
    %v119 = vpop.xlane.xlu0 %118
    %v120 = vcvt.f32.s32 %v119
    %v121 = vcvt.f32.s32 %v115
    %v122 = vshll.u32 %v121, 16
    %v123 = vadd.s32 %v122, %v120
    %vm124 = vcmp.eq.s32.totalorder %v109, %v123
    %v125 = vsel %vm124, 1.0, %v108
    %126 = vst [vmem:[#allocation8] sm:$0xff] %v125
    // Predicated region
    $region22: #{tpu_custom_call.1} parent=1 // pred_check
      _
    $region23: #{tpu_custom_call.1} parent=1 // pred_check_branch
      %128 = sbr.rel (0) target = $region25
    $region24: #{tpu_custom_call.1} parent=1 // pred_region
      %130 = vsyncadd [#allocation5], 0
      %s132 = sshll.u32 [#allocation8], 4
      %s133 = int_to_ptr.vmem [resolvable:$true] %s132
      %s134 = sshll.u32 %s3, 4
      %s135 = int_to_ptr.hbm [resolvable:$true] %s134
      %137 = dma.vmem_to_hbm [thread:$0]  %s133, 128, %s135, [#allocation5]
    $region25: #{tpu_custom_call.1} parent=1 // pred_fallthru
      _
    // Predicated region
    $region26: #{tpu_custom_call.1} parent=1 // pred_check
      _
    $region27: #{tpu_custom_call.1} parent=1 // pred_check_branch
      %139 = sbr.rel (0) target = $region29
    $region28: #{tpu_custom_call.1} parent=1 // pred_region
      %141 = dma.done [#allocation5], 128
    $region29: #{tpu_custom_call.1} parent=1 // pred_fallthru
      _
    %142 = vsyncpa [#allocation4], 1
    %143 = vsyncpa [#allocation7], 1
    %144 = vsyncpa [#allocation5], 1

</llo_original>
